<compile_context>
chip_gen: v6e
topology: v6e:2x2x1
jax: 0.10.0
libtpu: 0.0.40
codegen_flags: <defaults>
</compile_context>

<pallas_src>
import functools

import numpy as np
import jax
import jax.numpy as jnp
from jax.experimental import pallas as pl
from jax.experimental.pallas import tpu as pltpu


def _round_up(v, m):
    return ((v + m - 1) // m) * m


def _up_conv1_kernel(x2d_ref, g_ref, wmat_ref, params_ref, o_ref,
                     xp_ref, col_ref, *,
                     n_batch, c_in_p, h_out, w_out, wp, hw, hw_p, eps):
    ncols_p = n_batch * hw_p

    # (1) nearest-upsample + zero-pad + row-major flatten fused into ONE MXU
    #     matmul against a static 0/1 selection matrix (bf16 in HBM -> exact).
    xp_ref[...] = jnp.dot(x2d_ref[...], g_ref[...].astype(jnp.float32),
                          preferred_element_type=jnp.float32)

    # (2) im2col: 9 taps x n_batch contiguous copies.  Sublane offsets are
    #     multiples of 8 (C_in padded) and destination lane offsets multiples
    #     of 128 (hw padded to hw_p) -> unmasked vector stores.
    cdt = col_ref.dtype
    for k in range(9):
        dy, dx = divmod(k, 3)
        off = dy * wp + dx
        for n in range(n_batch):
            col_ref[k * c_in_p:(k + 1) * c_in_p,
                    n * hw_p:(n + 1) * hw_p] = xp_ref[
                n * c_in_p:(n + 1) * c_in_p, off:off + hw_p].astype(cdt)

    # (3) the whole 3x3 conv as ONE matmul with f32 MXU accumulation.
    #     Conv bias intentionally dropped: training-mode BatchNorm mean
    #     subtraction cancels it exactly.
    y = jnp.dot(wmat_ref[...], col_ref[...], preferred_element_type=jnp.float32)

    # (4) BatchNorm2d (training-mode batch stats, biased variance) + ReLU.
    #     Validity mask (drop wrap + lane-pad columns) built from an iota so it
    #     costs a few VPU ops instead of another DMA'd input.  The +0.5 nudge
    #     keeps floor(div) exact for integer-valued lanes.
    lane = jax.lax.broadcasted_iota(jnp.int32, (1, ncols_p), 1).astype(jnp.float32)
    within = lane - jnp.floor((lane + 0.5) / hw_p) * hw_p
    colj = within - jnp.floor((within + 0.5) / wp) * wp
    m = jnp.where((within < hw) & (colj < w_out), 1.0, 0.0)

    inv_cnt = 1.0 / float(n_batch * h_out * w_out)
    ym = y * m
    mean = jnp.sum(ym, axis=1, keepdims=True) * inv_cnt
    ex2 = jnp.sum(ym * y, axis=1, keepdims=True) * inv_cnt      # mask^2 == mask
    # TODO(synk): one-pass variance; switch to a centered second pass if the
    # per-channel means ever grow large relative to their std.
    var = jnp.maximum(ex2 - mean * mean, 0.0)
    gamma = params_ref[:, 0:1]
    beta = params_ref[:, 1:2]
    scale = gamma * jax.lax.rsqrt(var + eps)
    shift = beta - mean * scale

    # (5) single lane-dense slab store (unmasked vst); the wrapper strips the
    #     padded columns / channels and transposes to NCHW.
    o_ref[...] = jnp.maximum(y * scale + shift, 0.0)


@functools.partial(jax.jit, static_argnums=(4, 5, 6))
def _up_conv1_impl(x, w, gamma, beta, out_size, eps, conv_dtype_name):
    conv_dtype = jnp.dtype(conv_dtype_name)
    n_batch, c_in, h_in, w_in = x.shape
    c_out = w.shape[0]
    h_out, w_out = out_size

    c_in_p = _round_up(c_in, 8)        # sublane-align per-sample channel blocks
    c_out_p = _round_up(c_out, 8)
    s = h_in * w_in
    wp = w_out + 2                      # padded row length
    hw = h_out * wp                     # extended (wrap-col incl.) extent/sample
    hw_p = _round_up(hw, 128)           # lane-align per-sample column blocks
    ncols_p = n_batch * hw_p
    # padded-image columns per sample + room for tap-offset + hw_p-wide reads.
    lp = _round_up(max((h_out + 2) * wp, 2 * wp + 2 + hw_p), 128)

    # ---- constants: built once per shape at trace time (jit caches them) ----
    # PyTorch nearest rule: src = floor(dst * in/out).
    row_src = np.minimum(np.floor(np.arange(h_out) * (h_in / h_out)),
                         h_in - 1).astype(np.int64)
    col_src = np.minimum(np.floor(np.arange(w_out) * (w_in / w_out)),
                         w_in - 1).astype(np.int64)
    src = (row_src[:, None] * w_in + col_src[None, :]).ravel()
    dst = ((np.arange(h_out)[:, None] + 1) * wp
           + (np.arange(w_out)[None, :] + 1)).ravel()
    g_np = np.zeros((s, lp), np.float32)
    g_np[src, dst] = 1.0
    g = jnp.asarray(g_np, dtype=jnp.bfloat16)    # exact for {0,1}; half the DMA
    # TODO(synk): for large images replace the G gather-matmul with structured
    # repeats / manual DMA (it scales quadratically with spatial size).

    # ---- operands (tiny XLA-side relayouts, fused under jit) ----
    x3 = x.astype(jnp.float32).reshape(n_batch, c_in, s)
    x3 = jnp.pad(x3, ((0, 0), (0, c_in_p - c_in), (0, 0)))
    x2d = x3.reshape(n_batch * c_in_p, s)

    # (C_out, C_in, 3, 3) -> (C_out_p, 9*C_in_p), K ordered (dy, dx, c_in_p).
    wt = jnp.transpose(w.astype(jnp.float32), (0, 2, 3, 1))
    wt = jnp.pad(wt, ((0, c_out_p - c_out), (0, 0), (0, 0), (0, c_in_p - c_in)))
    wmat = wt.reshape(c_out_p, 9 * c_in_p).astype(conv_dtype)

    gamma_p = jnp.pad(gamma.astype(jnp.float32), (0, c_out_p - c_out),
                      constant_values=1.0)
    beta_p = jnp.pad(beta.astype(jnp.float32), (0, c_out_p - c_out))
    params = jnp.stack([gamma_p, beta_p], axis=1)            # (C_out_p, 2)

    # ---- VMEM budget (per-generation) / cost hints ----
    isz = conv_dtype.itemsize
    need = (x2d.size * 4 + g.size * 2 + wmat.size * isz + params.size * 4
            + c_out_p * ncols_p * 4
            + n_batch * c_in_p * lp * 4 + 9 * c_in_p * ncols_p * isz)
    try:
        info = pltpu.get_tpu_info()
        vmem_cap = int(getattr(info, "vmem_capacity_bytes", 64 * 1024 * 1024))
    except Exception:
        vmem_cap = 64 * 1024 * 1024
    vmem_limit = int(min(max(4 * need, 4 * 1024 * 1024), int(0.8 * vmem_cap)))

    flops = (2 * (n_batch * c_in_p) * s * lp
             + 2 * c_out_p * (9 * c_in_p) * ncols_p
             + 10 * c_out_p * ncols_p)
    bytes_accessed = int(x2d.size * 4 + g.size * 2 + wmat.size * isz
                         + params.size * 4 + c_out_p * ncols_p * 4)

    vmem = pl.BlockSpec(memory_space=pltpu.MemorySpace.VMEM)
    kernel = functools.partial(
        _up_conv1_kernel, n_batch=n_batch, c_in_p=c_in_p, h_out=h_out,
        w_out=w_out, wp=wp, hw=hw, hw_p=hw_p, eps=eps)

    # TODO(synk): for large N*H*W add a spatial/N grid (halo via index_map) with
    # a two-pass BatchNorm and dimension_semantics=("parallel", ...) so v7x's
    # second TensorCore is used; the monolithic form easily fits VMEM here.
    y_flat = pl.pallas_call(
        kernel,
        out_shape=jax.ShapeDtypeStruct((c_out_p, ncols_p), jnp.float32),
        in_specs=[vmem] * 4,
        out_specs=vmem,
        scratch_shapes=[pltpu.VMEM((n_batch * c_in_p, lp), jnp.float32),
                        pltpu.VMEM((9 * c_in_p, ncols_p), conv_dtype)],
        compiler_params=pltpu.CompilerParams(vmem_limit_bytes=vmem_limit),
        cost_estimate=pl.CostEstimate(flops=flops,
                                      transcendentals=c_out_p + 2 * ncols_p,
                                      bytes_accessed=bytes_accessed),
    )(x2d, g, wmat, params)

    # Strip lane padding + wrap columns + channel padding; -> NCHW.
    y = y_flat.reshape(c_out_p, n_batch, hw_p)[:, :, :hw]
    y = y.reshape(c_out_p, n_batch, h_out, wp)[:, :, :, :w_out]
    return jnp.transpose(y, (1, 0, 2, 3))[:, :c_out]


def up_conv1(x, w, b, gamma, beta, *, out_size, eps=1e-5, conv_dtype=jnp.float32):
    """Pallas forward of up_conv1.  x: (N, C_in, H_in, W_in), PyTorch NCHW.

    conv_dtype=jnp.bfloat16 is the better choice on v6e/v7x at larger shapes
    (bf16-native MXU, halves the col scratch); the f32 default keeps the strict
    1e-3 accuracy check below.
    """
    del b  # no-op under training-mode BatchNorm (cancelled by mean subtraction)
    return _up_conv1_impl(x, w, gamma, beta,
                          (int(out_size[0]), int(out_size[1])),
                          float(eps), jnp.dtype(conv_dtype).name)


def up_conv1_ref(x, w, b, gamma, beta, *, out_size, eps=1e-5):
    """Pure-JAX reference (same math via XLA conv), for correctness checking."""
    _, _, h_in, w_in = x.shape
    h_out, w_out = out_size
    row = jnp.asarray(np.minimum(np.floor(np.arange(h_out) * (h_in / h_out)),
                                 h_in - 1).astype(np.int32))
    col = jnp.asarray(np.minimum(np.floor(np.arange(w_out) * (w_in / w_out)),
                                 w_in - 1).astype(np.int32))
    xu = x[:, :, row, :][:, :, :, col]                    # nearest upsample
    y = jax.lax.conv_general_dilated(
        xu, w, window_strides=(1, 1), padding=((1, 1), (1, 1)),
        dimension_numbers=("NCHW", "OIHW", "NCHW"))
    y = y + b.reshape(1, -1, 1, 1)
    mean = jnp.mean(y, axis=(0, 2, 3), keepdims=True)
    var = jnp.mean((y - mean) ** 2, axis=(0, 2, 3), keepdims=True)
    y = (y - mean) * jax.lax.rsqrt(var + eps)
    y = y * gamma.reshape(1, -1, 1, 1) + beta.reshape(1, -1, 1, 1)
    return jnp.maximum(y, 0.0)


def init_params(key, c_in, c_out):
    """Deterministic init mirroring Conv2d/BatchNorm2d parameter shapes."""
    kw, kb = jax.random.split(key)
    bound = 1.0 / float(np.sqrt(c_in * 9))
    w = jax.random.uniform(kw, (c_out, c_in, 3, 3), jnp.float32, -bound, bound)
    b = jax.random.uniform(kb, (c_out,), jnp.float32, -bound, bound)
    gamma = jnp.ones((c_out,), jnp.float32)   # BatchNorm2d default init
    beta = jnp.zeros((c_out,), jnp.float32)
    return w, b, gamma, beta


if __name__ == "__main__":
    N, C_IN, H_IN, W_IN = 2, 4, 8, 8          # input to up_conv1
    C_OUT, H_OUT, W_OUT = 8, 16, 16           # ch_out, numsize1, numsize2

    key = jax.random.PRNGKey(0)
    k_x, k_p = jax.random.split(key)
    x = jax.random.normal(k_x, (N, C_IN, H_IN, W_IN), jnp.float32)
    w, b, gamma, beta = init_params(k_p, C_IN, C_OUT)

    out = jax.block_until_ready(
        up_conv1(x, w, b, gamma, beta, out_size=(H_OUT, W_OUT)))
    ref = up_conv1_ref(x, w, b, gamma, beta, out_size=(H_OUT, W_OUT))

    assert out.shape == (N, C_OUT, H_OUT, W_OUT), out.shape
    max_err = float(jnp.max(jnp.abs(out - ref)))
    assert jnp.allclose(out, ref, atol=1e-3, rtol=1e-3), max_err
    print("KERNEL_OK")
</pallas_src>

<mosaic_0001>
module attributes {stable_mosaic.version = 11 : i64} {
  func.func @_up_conv1_kernel(%arg0: memref<16x64xf32, #tpu.memory_space<vmem>>, %arg1: memref<64x512xbf16, #tpu.memory_space<vmem>>, %arg2: memref<8x72xf32, #tpu.memory_space<vmem>>, %arg3: memref<8x2xf32, #tpu.memory_space<vmem>>, %arg4: memref<8x768xf32, #tpu.memory_space<vmem>>, %arg5: memref<16x512xf32, #tpu.memory_space<vmem>>, %arg6: memref<72x768xf32, #tpu.memory_space<vmem>>) attributes {dimension_semantics = [], scalar_prefetch = 0 : i64, scratch_operands = 2 : i64, tpu.core_type = #tpu.core_type<tc>} {
    %c0 = arith.constant 0 : index
    %c0_0 = arith.constant 0 : index
    %0 = vector.load %arg0[%c0, %c0_0] : memref<16x64xf32, #tpu.memory_space<vmem>>, vector<16x64xf32>
    %c0_1 = arith.constant 0 : index
    %c0_2 = arith.constant 0 : index
    %1 = vector.load %arg1[%c0_1, %c0_2] : memref<64x512xbf16, #tpu.memory_space<vmem>>, vector<64x512xbf16>
    %2 = arith.extf %1 : vector<64x512xbf16> to vector<64x512xf32>
    %cst = arith.constant dense<0.000000e+00> : vector<16x512xf32>
    %3 = tpu.matmul %0, %2, %cst {dimension_numbers = #tpu.dot_dimension_numbers<[1], [0], [0], [1], [0, 0, 1, 1], [], []>} : vector<16x64xf32>, vector<64x512xf32>, vector<16x512xf32> -> vector<16x512xf32>
    %c0_3 = arith.constant 0 : index
    %c0_4 = arith.constant 0 : index
    %4 = vector.load %arg5[%c0_3, %c0_4] : memref<16x512xf32, #tpu.memory_space<vmem>>, vector<16x512xf32>
    tpu.vector_store %arg5[%c0_3, %c0_4], %3 {strides = array<i32>} : memref<16x512xf32, #tpu.memory_space<vmem>>, vector<16x512xf32>,
    %c0_5 = arith.constant 0 : index
    %c0_6 = arith.constant 0 : index
    %5 = vector.load %arg5[%c0_5, %c0_6] : memref<16x512xf32, #tpu.memory_space<vmem>>, vector<8x384xf32>
    %c0_7 = arith.constant 0 : index
    %c0_8 = arith.constant 0 : index
    %6 = vector.load %arg6[%c0_7, %c0_8] : memref<72x768xf32, #tpu.memory_space<vmem>>, vector<8x384xf32>
    tpu.vector_store %arg6[%c0_7, %c0_8], %5 {strides = array<i32>} : memref<72x768xf32, #tpu.memory_space<vmem>>, vector<8x384xf32>,
    %c8 = arith.constant 8 : index
    %c0_9 = arith.constant 0 : index
    %7 = vector.load %arg5[%c8, %c0_9] : memref<16x512xf32, #tpu.memory_space<vmem>>, vector<8x384xf32>
    %c0_10 = arith.constant 0 : index
    %c384 = arith.constant 384 : index
    %8 = vector.load %arg6[%c0_10, %c384] : memref<72x768xf32, #tpu.memory_space<vmem>>, vector<8x384xf32>
    tpu.vector_store %arg6[%c0_10, %c384], %7 {strides = array<i32>} : memref<72x768xf32, #tpu.memory_space<vmem>>, vector<8x384xf32>,
    %c0_11 = arith.constant 0 : index
    %c1 = arith.constant 1 : index
    %9 = vector.load %arg5[%c0_11, %c1] : memref<16x512xf32, #tpu.memory_space<vmem>>, vector<8x384xf32>
    %c8_12 = arith.constant 8 : index
    %c0_13 = arith.constant 0 : index
    %10 = vector.load %arg6[%c8_12, %c0_13] : memref<72x768xf32, #tpu.memory_space<vmem>>, vector<8x384xf32>
    tpu.vector_store %arg6[%c8_12, %c0_13], %9 {strides = array<i32>} : memref<72x768xf32, #tpu.memory_space<vmem>>, vector<8x384xf32>,
    %c8_14 = arith.constant 8 : index
    %c1_15 = arith.constant 1 : index
    %11 = vector.load %arg5[%c8_14, %c1_15] : memref<16x512xf32, #tpu.memory_space<vmem>>, vector<8x384xf32>
    %c8_16 = arith.constant 8 : index
    %c384_17 = arith.constant 384 : index
    %12 = vector.load %arg6[%c8_16, %c384_17] : memref<72x768xf32, #tpu.memory_space<vmem>>, vector<8x384xf32>
    tpu.vector_store %arg6[%c8_16, %c384_17], %11 {strides = array<i32>} : memref<72x768xf32, #tpu.memory_space<vmem>>, vector<8x384xf32>,
    %c0_18 = arith.constant 0 : index
    %c2 = arith.constant 2 : index
    %13 = vector.load %arg5[%c0_18, %c2] : memref<16x512xf32, #tpu.memory_space<vmem>>, vector<8x384xf32>
    %c16 = arith.constant 16 : index
    %c0_19 = arith.constant 0 : index
    %14 = vector.load %arg6[%c16, %c0_19] : memref<72x768xf32, #tpu.memory_space<vmem>>, vector<8x384xf32>
    tpu.vector_store %arg6[%c16, %c0_19], %13 {strides = array<i32>} : memref<72x768xf32, #tpu.memory_space<vmem>>, vector<8x384xf32>,
    %c8_20 = arith.constant 8 : index
    %c2_21 = arith.constant 2 : index
    %15 = vector.load %arg5[%c8_20, %c2_21] : memref<16x512xf32, #tpu.memory_space<vmem>>, vector<8x384xf32>
    %c16_22 = arith.constant 16 : index
    %c384_23 = arith.constant 384 : index
    %16 = vector.load %arg6[%c16_22, %c384_23] : memref<72x768xf32, #tpu.memory_space<vmem>>, vector<8x384xf32>
    tpu.vector_store %arg6[%c16_22, %c384_23], %15 {strides = array<i32>} : memref<72x768xf32, #tpu.memory_space<vmem>>, vector<8x384xf32>,
    %c0_24 = arith.constant 0 : index
    %c18 = arith.constant 18 : index
    %17 = vector.load %arg5[%c0_24, %c18] : memref<16x512xf32, #tpu.memory_space<vmem>>, vector<8x384xf32>
    %c24 = arith.constant 24 : index
    %c0_25 = arith.constant 0 : index
    %18 = vector.load %arg6[%c24, %c0_25] : memref<72x768xf32, #tpu.memory_space<vmem>>, vector<8x384xf32>
    tpu.vector_store %arg6[%c24, %c0_25], %17 {strides = array<i32>} : memref<72x768xf32, #tpu.memory_space<vmem>>, vector<8x384xf32>,
    %c8_26 = arith.constant 8 : index
    %c18_27 = arith.constant 18 : index
    %19 = vector.load %arg5[%c8_26, %c18_27] : memref<16x512xf32, #tpu.memory_space<vmem>>, vector<8x384xf32>
    %c24_28 = arith.constant 24 : index
    %c384_29 = arith.constant 384 : index
    %20 = vector.load %arg6[%c24_28, %c384_29] : memref<72x768xf32, #tpu.memory_space<vmem>>, vector<8x384xf32>
    tpu.vector_store %arg6[%c24_28, %c384_29], %19 {strides = array<i32>} : memref<72x768xf32, #tpu.memory_space<vmem>>, vector<8x384xf32>,
    %c0_30 = arith.constant 0 : index
    %c19 = arith.constant 19 : index
    %21 = vector.load %arg5[%c0_30, %c19] : memref<16x512xf32, #tpu.memory_space<vmem>>, vector<8x384xf32>
    %c32 = arith.constant 32 : index
    %c0_31 = arith.constant 0 : index
    %22 = vector.load %arg6[%c32, %c0_31] : memref<72x768xf32, #tpu.memory_space<vmem>>, vector<8x384xf32>
    tpu.vector_store %arg6[%c32, %c0_31], %21 {strides = array<i32>} : memref<72x768xf32, #tpu.memory_space<vmem>>, vector<8x384xf32>,
    %c8_32 = arith.constant 8 : index
    %c19_33 = arith.constant 19 : index
    %23 = vector.load %arg5[%c8_32, %c19_33] : memref<16x512xf32, #tpu.memory_space<vmem>>, vector<8x384xf32>
    %c32_34 = arith.constant 32 : index
    %c384_35 = arith.constant 384 : index
    %24 = vector.load %arg6[%c32_34, %c384_35] : memref<72x768xf32, #tpu.memory_space<vmem>>, vector<8x384xf32>
    tpu.vector_store %arg6[%c32_34, %c384_35], %23 {strides = array<i32>} : memref<72x768xf32, #tpu.memory_space<vmem>>, vector<8x384xf32>,
    %c0_36 = arith.constant 0 : index
    %c20 = arith.constant 20 : index
    %25 = vector.load %arg5[%c0_36, %c20] : memref<16x512xf32, #tpu.memory_space<vmem>>, vector<8x384xf32>
    %c40 = arith.constant 40 : index
    %c0_37 = arith.constant 0 : index
    %26 = vector.load %arg6[%c40, %c0_37] : memref<72x768xf32, #tpu.memory_space<vmem>>, vector<8x384xf32>
    tpu.vector_store %arg6[%c40, %c0_37], %25 {strides = array<i32>} : memref<72x768xf32, #tpu.memory_space<vmem>>, vector<8x384xf32>,
    %c8_38 = arith.constant 8 : index
    %c20_39 = arith.constant 20 : index
    %27 = vector.load %arg5[%c8_38, %c20_39] : memref<16x512xf32, #tpu.memory_space<vmem>>, vector<8x384xf32>
    %c40_40 = arith.constant 40 : index
    %c384_41 = arith.constant 384 : index
    %28 = vector.load %arg6[%c40_40, %c384_41] : memref<72x768xf32, #tpu.memory_space<vmem>>, vector<8x384xf32>
    tpu.vector_store %arg6[%c40_40, %c384_41], %27 {strides = array<i32>} : memref<72x768xf32, #tpu.memory_space<vmem>>, vector<8x384xf32>,
    %c0_42 = arith.constant 0 : index
    %c36 = arith.constant 36 : index
    %29 = vector.load %arg5[%c0_42, %c36] : memref<16x512xf32, #tpu.memory_space<vmem>>, vector<8x384xf32>
    %c48 = arith.constant 48 : index
    %c0_43 = arith.constant 0 : index
    %30 = vector.load %arg6[%c48, %c0_43] : memref<72x768xf32, #tpu.memory_space<vmem>>, vector<8x384xf32>
    tpu.vector_store %arg6[%c48, %c0_43], %29 {strides = array<i32>} : memref<72x768xf32, #tpu.memory_space<vmem>>, vector<8x384xf32>,
    %c8_44 = arith.constant 8 : index
    %c36_45 = arith.constant 36 : index
    %31 = vector.load %arg5[%c8_44, %c36_45] : memref<16x512xf32, #tpu.memory_space<vmem>>, vector<8x384xf32>
    %c48_46 = arith.constant 48 : index
    %c384_47 = arith.constant 384 : index
    %32 = vector.load %arg6[%c48_46, %c384_47] : memref<72x768xf32, #tpu.memory_space<vmem>>, vector<8x384xf32>
    tpu.vector_store %arg6[%c48_46, %c384_47], %31 {strides = array<i32>} : memref<72x768xf32, #tpu.memory_space<vmem>>, vector<8x384xf32>,
    %c0_48 = arith.constant 0 : index
    %c37 = arith.constant 37 : index
    %33 = vector.load %arg5[%c0_48, %c37] : memref<16x512xf32, #tpu.memory_space<vmem>>, vector<8x384xf32>
    %c56 = arith.constant 56 : index
    %c0_49 = arith.constant 0 : index
    %34 = vector.load %arg6[%c56, %c0_49] : memref<72x768xf32, #tpu.memory_space<vmem>>, vector<8x384xf32>
    tpu.vector_store %arg6[%c56, %c0_49], %33 {strides = array<i32>} : memref<72x768xf32, #tpu.memory_space<vmem>>, vector<8x384xf32>,
    %c8_50 = arith.constant 8 : index
    %c37_51 = arith.constant 37 : index
    %35 = vector.load %arg5[%c8_50, %c37_51] : memref<16x512xf32, #tpu.memory_space<vmem>>, vector<8x384xf32>
    %c56_52 = arith.constant 56 : index
    %c384_53 = arith.constant 384 : index
    %36 = vector.load %arg6[%c56_52, %c384_53] : memref<72x768xf32, #tpu.memory_space<vmem>>, vector<8x384xf32>
    tpu.vector_store %arg6[%c56_52, %c384_53], %35 {strides = array<i32>} : memref<72x768xf32, #tpu.memory_space<vmem>>, vector<8x384xf32>,
    %c0_54 = arith.constant 0 : index
    %c38 = arith.constant 38 : index
    %37 = vector.load %arg5[%c0_54, %c38] : memref<16x512xf32, #tpu.memory_space<vmem>>, vector<8x384xf32>
    %c64 = arith.constant 64 : index
    %c0_55 = arith.constant 0 : index
    %38 = vector.load %arg6[%c64, %c0_55] : memref<72x768xf32, #tpu.memory_space<vmem>>, vector<8x384xf32>
    tpu.vector_store %arg6[%c64, %c0_55], %37 {strides = array<i32>} : memref<72x768xf32, #tpu.memory_space<vmem>>, vector<8x384xf32>,
    %c8_56 = arith.constant 8 : index
    %c38_57 = arith.constant 38 : index
    %39 = vector.load %arg5[%c8_56, %c38_57] : memref<16x512xf32, #tpu.memory_space<vmem>>, vector<8x384xf32>
    %c64_58 = arith.constant 64 : index
    %c384_59 = arith.constant 384 : index
    %40 = vector.load %arg6[%c64_58, %c384_59] : memref<72x768xf32, #tpu.memory_space<vmem>>, vector<8x384xf32>
    tpu.vector_store %arg6[%c64_58, %c384_59], %39 {strides = array<i32>} : memref<72x768xf32, #tpu.memory_space<vmem>>, vector<8x384xf32>,
    %c0_60 = arith.constant 0 : index
    %c0_61 = arith.constant 0 : index
    %41 = vector.load %arg2[%c0_60, %c0_61] : memref<8x72xf32, #tpu.memory_space<vmem>>, vector<8x72xf32>
    %c0_62 = arith.constant 0 : index
    %c0_63 = arith.constant 0 : index
    %42 = vector.load %arg6[%c0_62, %c0_63] : memref<72x768xf32, #tpu.memory_space<vmem>>, vector<72x768xf32>
    %cst_64 = arith.constant dense<0.000000e+00> : vector<8x768xf32>
    %43 = tpu.matmul %41, %42, %cst_64 {dimension_numbers = #tpu.dot_dimension_numbers<[1], [0], [0], [1], [0, 0, 1, 1], [], []>} : vector<8x72xf32>, vector<72x768xf32>, vector<8x768xf32> -> vector<8x768xf32>
    %44 = tpu.iota {dimensions = array<i32: 1>} : vector<1x768xi32>
    %45 = arith.sitofp %44 : vector<1x768xi32> to vector<1x768xf32>
    %cst_65 = arith.constant 5.000000e-01 : f32
    %46 = vector.broadcast %cst_65 : f32 to vector<1x768xf32>
    %47 = arith.addf %45, %46 : vector<1x768xf32>
    %cst_66 = arith.constant 3.840000e+02 : f32
    %48 = vector.broadcast %cst_66 : f32 to vector<1x768xf32>
    %49 = arith.divf %47, %48 : vector<1x768xf32>
    %50 = math.floor %49 : vector<1x768xf32>
    %cst_67 = arith.constant 3.840000e+02 : f32
    %51 = vector.broadcast %cst_67 : f32 to vector<1x768xf32>
    %52 = arith.mulf %50, %51 : vector<1x768xf32>
    %53 = arith.subf %45, %52 : vector<1x768xf32>
    %cst_68 = arith.constant 5.000000e-01 : f32
    %54 = vector.broadcast %cst_68 : f32 to vector<1x768xf32>
    %55 = arith.addf %53, %54 : vector<1x768xf32>
    %cst_69 = arith.constant 1.800000e+01 : f32
    %56 = vector.broadcast %cst_69 : f32 to vector<1x768xf32>
    %57 = arith.divf %55, %56 : vector<1x768xf32>
    %58 = math.floor %57 : vector<1x768xf32>
    %cst_70 = arith.constant 1.800000e+01 : f32
    %59 = vector.broadcast %cst_70 : f32 to vector<1x768xf32>
    %60 = arith.mulf %58, %59 : vector<1x768xf32>
    %61 = arith.subf %53, %60 : vector<1x768xf32>
    %cst_71 = arith.constant 2.880000e+02 : f32
    %62 = vector.broadcast %cst_71 : f32 to vector<1x768xf32>
    %63 = arith.cmpf olt, %53, %62 : vector<1x768xf32>
    %cst_72 = arith.constant 1.600000e+01 : f32
    %64 = vector.broadcast %cst_72 : f32 to vector<1x768xf32>
    %65 = arith.cmpf olt, %61, %64 : vector<1x768xf32>
    %66 = arith.andi %63, %65 : vector<1x768xi1>
    %cst_73 = arith.constant 1.000000e+00 : f32
    %cst_74 = arith.constant 0.000000e+00 : f32
    %67 = vector.broadcast %cst_73 : f32 to vector<1x768xf32>
    %68 = vector.broadcast %cst_74 : f32 to vector<1x768xf32>
    %69 = arith.select %66, %67, %68 : vector<1x768xi1>, vector<1x768xf32>
    %70 = vector.broadcast %69 : vector<1x768xf32> to vector<8x768xf32>
    %71 = arith.mulf %43, %70 : vector<8x768xf32>
    %cst_75 = arith.constant dense<0.000000e+00> : vector<8xf32>
    %72 = vector.multi_reduction <add>, %71, %cst_75 [1] : vector<8x768xf32> to vector<8xf32>
    %73 = vector.shape_cast %72 : vector<8xf32> to vector<8x1xf32>
    %cst_76 = arith.constant 0.001953125 : f32
    %74 = vector.broadcast %cst_76 : f32 to vector<8x1xf32>
    %75 = arith.mulf %73, %74 : vector<8x1xf32>
    %76 = arith.mulf %71, %43 : vector<8x768xf32>
    %cst_77 = arith.constant dense<0.000000e+00> : vector<8xf32>
    %77 = vector.multi_reduction <add>, %76, %cst_77 [1] : vector<8x768xf32> to vector<8xf32>
    %78 = vector.shape_cast %77 : vector<8xf32> to vector<8x1xf32>
    %cst_78 = arith.constant 0.001953125 : f32
    %79 = vector.broadcast %cst_78 : f32 to vector<8x1xf32>
    %80 = arith.mulf %78, %79 : vector<8x1xf32>
    %81 = arith.mulf %75, %75 : vector<8x1xf32>
    %82 = arith.subf %80, %81 : vector<8x1xf32>
    %cst_79 = arith.constant 0.000000e+00 : f32
    %83 = vector.broadcast %cst_79 : f32 to vector<8x1xf32>
    %84 = arith.maximumf %82, %83 : vector<8x1xf32>
    %c0_80 = arith.constant 0 : index
    %c0_81 = arith.constant 0 : index
    %85 = vector.load %arg3[%c0_80, %c0_81] : memref<8x2xf32, #tpu.memory_space<vmem>>, vector<8x1xf32>
    %c0_82 = arith.constant 0 : index
    %c1_83 = arith.constant 1 : index
    %86 = vector.load %arg3[%c0_82, %c1_83] : memref<8x2xf32, #tpu.memory_space<vmem>>, vector<8x1xf32>
    %cst_84 = arith.constant 9.99999974E-6 : f32
    %87 = vector.broadcast %cst_84 : f32 to vector<8x1xf32>
    %88 = arith.addf %84, %87 : vector<8x1xf32>
    %89 = math.rsqrt %88 : vector<8x1xf32>
    %90 = arith.mulf %85, %89 : vector<8x1xf32>
    %91 = arith.mulf %75, %90 : vector<8x1xf32>
    %92 = arith.subf %86, %91 : vector<8x1xf32>
    %93 = vector.broadcast %90 : vector<8x1xf32> to vector<8x768xf32>
    %94 = arith.mulf %43, %93 : vector<8x768xf32>
    %95 = vector.broadcast %92 : vector<8x1xf32> to vector<8x768xf32>
    %96 = arith.addf %94, %95 : vector<8x768xf32>
    %cst_85 = arith.constant 0.000000e+00 : f32
    %97 = vector.broadcast %cst_85 : f32 to vector<8x768xf32>
    %98 = arith.maximumf %96, %97 : vector<8x768xf32>
    %c0_86 = arith.constant 0 : index
    %c0_87 = arith.constant 0 : index
    %99 = vector.load %arg4[%c0_86, %c0_87] : memref<8x768xf32, #tpu.memory_space<vmem>>, vector<8x768xf32>
    tpu.vector_store %arg4[%c0_86, %c0_87], %98 {strides = array<i32>} : memref<8x768xf32, #tpu.memory_space<vmem>>, vector<8x768xf32>,
    return
  }
}

</mosaic_0001>

<llo_original>
// kernel: _up_conv1_impl.1
$region0: #{_up_conv1_impl.1}
  #allocation0 [shape = 'u32[]', space=smem, size = 0x4, offset = 0x4, fixed_abs, tag = 'smem constant byte address 0x4 - core index']
  #allocation1 [shape = 'u32[144,128]{1,0:T(1,128)}', space=vmem, size = 0x12000, scoped, tag = 'internal scratch']
  #allocation2 [shape = 'f32[16,512]{1,0:T(8,128)}', space=vmem, size = 0x8000, scoped, tag = 'scratch operand']
  #allocation3 [shape = 'f32[72,768]{1,0:T(8,128)}', space=vmem, size = 0x36000, scoped, tag = 'scratch operand']
  %s0 = inlined_call_operand.vmem [shape: f32[16,64], index: 0, kind: input, shape index: {}]
  %s1 = inlined_call_operand.vmem [shape: bf16[64,512], index: 1, kind: input, shape index: {}]
  %s2 = inlined_call_operand.vmem [shape: f32[8,72], index: 2, kind: input, shape index: {}]
  %s3 = inlined_call_operand.vmem [shape: f32[8,2], index: 3, kind: input, shape index: {}]
  %s4 = inlined_call_operand.vmem [shape: f32[8,768], index: 4, kind: output, shape index: {}]
  %s5 = sld [smem:[#allocation0]]
  $region26: #{_up_conv1_impl.1} parent=0
    _
  %s7 = ssub.s32 1, %s5
  %s8 = scalar_select 0, %s7, %s5
  // Predicated region
  $region2: #{_up_conv1_impl.1} parent=0 // pred_check
    _
  $region3: #{_up_conv1_impl.1} parent=0 // pred_check_branch
    %10 = sbr.rel (0) target = $region5
  $region4: #{_up_conv1_impl.1} parent=0 // pred_region
    _
  $region5: #{_up_conv1_impl.1} parent=0 // pred_fallthru
    _
  // Predicated region
  $region6: #{_up_conv1_impl.1} parent=0 // pred_check
    _
  $region7: #{_up_conv1_impl.1} parent=0 // pred_check_branch
    %12 = sbr.rel (0) target = $region9
  $region8: #{_up_conv1_impl.1} parent=0 // pred_region
    _
  $region9: #{_up_conv1_impl.1} parent=0 // pred_fallthru
    _
  // Predicated region
  $region10: #{_up_conv1_impl.1} parent=0 // pred_check
    _
  $region11: #{_up_conv1_impl.1} parent=0 // pred_check_branch
    %14 = sbr.rel (0) target = $region13
  $region12: #{_up_conv1_impl.1} parent=0 // pred_region
    _
  $region13: #{_up_conv1_impl.1} parent=0 // pred_fallthru
    _
  // Predicated region
  $region14: #{_up_conv1_impl.1} parent=0 // pred_check
    _
  $region15: #{_up_conv1_impl.1} parent=0 // pred_check_branch
    %16 = sbr.rel (0) target = $region17
  $region16: #{_up_conv1_impl.1} parent=0 // pred_region
    _
  $region17: #{_up_conv1_impl.1} parent=0 // pred_fallthru
    _
  %v17 = vld [vmem:[%s0] sm:$0xff]
  %v18 = vld [vmem:[%s0 + $0x8] sm:$0xff]
  %v19 = vld [vmem:[%s1] sm:$0xff]
  %v20 = vld [vmem:[%s1 + $0x8] sm:$0xff]
  %v21 = vld [vmem:[%s1 + $0x10] sm:$0xff]
  %v22 = vld [vmem:[%s1 + $0x18] sm:$0xff]
  %v23 = vld [vmem:[%s1 + $0x20] sm:$0xff]
  %v24 = vld [vmem:[%s1 + $0x28] sm:$0xff]
  %v25 = vld [vmem:[%s1 + $0x30] sm:$0xff]
  %v26 = vld [vmem:[%s1 + $0x38] sm:$0xff]
  %v27 = vld [vmem:[%s1 + $0x40] sm:$0xff]
  %v28 = vld [vmem:[%s1 + $0x48] sm:$0xff]
  %v29 = vld [vmem:[%s1 + $0x50] sm:$0xff]
  %v30 = vld [vmem:[%s1 + $0x58] sm:$0xff]
  %v31 = vld [vmem:[%s1 + $0x60] sm:$0xff]
  %v32 = vld [vmem:[%s1 + $0x68] sm:$0xff]
  %v33 = vld [vmem:[%s1 + $0x70] sm:$0xff]
  %v34 = vld [vmem:[%s1 + $0x78] sm:$0xff]
  %v35 = vunpack.c.l.bf16 %v19
  %v36 = vunpack.c.h.bf16 %v19
  %v37 = vunpack.c.l.bf16 %v20
  %v38 = vunpack.c.h.bf16 %v20
  %v39 = vunpack.c.l.bf16 %v21
  %v40 = vunpack.c.h.bf16 %v21
  %v41 = vunpack.c.l.bf16 %v22
  %v42 = vunpack.c.h.bf16 %v22
  %v43 = vunpack.c.l.bf16 %v23
  %v44 = vunpack.c.h.bf16 %v23
  %v45 = vunpack.c.l.bf16 %v24
  %v46 = vunpack.c.h.bf16 %v24
  %v47 = vunpack.c.l.bf16 %v25
  %v48 = vunpack.c.h.bf16 %v25
  %v49 = vunpack.c.l.bf16 %v26
  %v50 = vunpack.c.h.bf16 %v26
  %v51 = vunpack.c.l.bf16 %v27
  %v52 = vunpack.c.h.bf16 %v27
  %v53 = vunpack.c.l.bf16 %v28
  %v54 = vunpack.c.h.bf16 %v28
  %v55 = vunpack.c.l.bf16 %v29
  %v56 = vunpack.c.h.bf16 %v29
  %v57 = vunpack.c.l.bf16 %v30
  %v58 = vunpack.c.h.bf16 %v30
  %v59 = vunpack.c.l.bf16 %v31
  %v60 = vunpack.c.h.bf16 %v31
  %v61 = vunpack.c.l.bf16 %v32
  %v62 = vunpack.c.h.bf16 %v32
  %v63 = vunpack.c.l.bf16 %v33
  %v64 = vunpack.c.h.bf16 %v33
  %v65 = vunpack.c.l.bf16 %v34
  %v66 = vunpack.c.h.bf16 %v34
  %vm67 = vcmask 523264
  %v69 = vsel %vm67, %v17, 0
  %v72 = vsel %vm67, %v18, 0
  %74 = vmatprep.subr.mxu0 0.0
  %75 = vmatpush1.msra.mxu0 0.0
  %76 = vmatprep.subr.mxu0 0.0
  %77 = vmatpush1.msra.mxu0 0.0
  %78 = vmatprep.subr.mxu0 0.0
  %79 = vmatpush1.msra.mxu0 0.0
  %80 = vmatprep.subr.mxu0 0.0
  %81 = vmatpush1.msra.mxu0 0.0
  %82 = vmatprep.subr.mxu0 0.0
  %83 = vmatpush1.msra.mxu0 0.0
  %84 = vmatprep.subr.mxu0 0.0
  %85 = vmatpush1.msra.mxu0 0.0
  %86 = vmatprep.subr.mxu0 0.0
  %87 = vmatpush1.msra.mxu0 0.0
  %88 = vmatprep.subr.mxu0 0.0
  %89 = vmatpush1.msra.mxu0 0.0
  %90 = vmatprep.subr.mxu0 %v64
  %91 = vmatpush1.msra.mxu0 %v63
  %92 = vmatprep.subr.mxu0 %v60
  %93 = vmatpush1.msra.mxu0 %v59
  %94 = vmatprep.subr.mxu0 %v56
  %95 = vmatpush1.msra.mxu0 %v55
  %96 = vmatprep.subr.mxu0 %v52
  %97 = vmatpush1.msra.mxu0 %v51
  %98 = vmatprep.subr.mxu0 %v48
  %99 = vmatpush1.msra.mxu0 %v47
  %100 = vmatprep.subr.mxu0 %v44
  %101 = vmatpush1.msra.mxu0 %v43
  %102 = vmatprep.subr.mxu0 %v40
  %103 = vmatpush1.msra.mxu0 %v39
  %104 = vmatprep.subr.mxu0 %v36
  %105 = vmatpush1.msra.mxu0 %v35
  %106 = vmatprep.subr.mxu0 0.0
  %107 = vmatpush2.msra.mxu0 0.0
  %108 = vmatprep.subr.mxu0 0.0
  %109 = vmatpush2.msra.mxu0 0.0
  %110 = vmatprep.subr.mxu0 0.0
  %111 = vmatpush2.msra.mxu0 0.0
  %112 = vmatprep.subr.mxu0 0.0
  %113 = vmatpush2.msra.mxu0 0.0
  %114 = vmatprep.subr.mxu0 0.0
  %115 = vmatpush2.msra.mxu0 0.0
  %116 = vmatprep.subr.mxu0 0.0
  %117 = vmatpush2.msra.mxu0 0.0
  %118 = vmatprep.subr.mxu0 0.0
  %119 = vmatpush2.msra.mxu0 0.0
  %120 = vmatprep.subr.mxu0 0.0
  %121 = vmatpush2.msra.mxu0 0.0
  %122 = vmatprep.subr.mxu0 0.0
  %123 = vmatpush2.msra.mxu0 0.0
  %124 = vmatprep.subr.mxu0 0.0
  %125 = vmatpush2.msra.mxu0 0.0
  %126 = vmatprep.subr.mxu0 0.0
  %127 = vmatpush2.msra.mxu0 0.0
  %128 = vmatprep.subr.mxu0 0.0
  %129 = vmatpush2.msra.mxu0 0.0
  %130 = vmatprep.subr.mxu0 0.0
  %131 = vmatpush2.msra.mxu0 0.0
  %132 = vmatprep.subr.mxu0 0.0
  %133 = vmatpush2.msra.mxu0 0.0
  %134 = vmatprep.subr.mxu0 0.0
  %135 = vmatpush2.msra.mxu0 0.0
  %136 = vmatprep.subr.mxu0 0.0
  %137 = vmatpush2.msra.mxu0 0.0
  %138 = vmatprep.mubr.f32.mxu0 0.0
  %139 = vmatmul.mubr.f32.gmra.mxu0 %v69
  %v140 = vpop.f32.mrf.mxu0
  %v141 = vadd.f32 0.0, %v140
  %v142 = vpop.f32.mrf.mxu0
  %v143 = vadd.f32 0.0, %v142
  %144 = vmatprep.mubr.f32.mxu0 0.0
  %145 = vmatmul.mubr.f32.gmra.mxu0 %v72
  %v146 = vpop.f32.mrf.mxu0
  %v147 = vadd.f32 0.0, %v146
  %v148 = vpop.f32.mrf.mxu0
  %v149 = vadd.f32 0.0, %v148
  %150 = vdwg.mxu0
  %151 = vmatprep.subr.mxu0 0.0
  %152 = vmatpush1.msra.mxu0 0.0
  %153 = vmatprep.subr.mxu0 0.0
  %154 = vmatpush1.msra.mxu0 0.0
  %155 = vmatprep.subr.mxu0 0.0
  %156 = vmatpush1.msra.mxu0 0.0
  %157 = vmatprep.subr.mxu0 0.0
  %158 = vmatpush1.msra.mxu0 0.0
  %159 = vmatprep.subr.mxu0 0.0
  %160 = vmatpush1.msra.mxu0 0.0
  %161 = vmatprep.subr.mxu0 0.0
  %162 = vmatpush1.msra.mxu0 0.0
  %163 = vmatprep.subr.mxu0 0.0
  %164 = vmatpush1.msra.mxu0 0.0
  %165 = vmatprep.subr.mxu0 0.0
  %166 = vmatpush1.msra.mxu0 0.0
  %167 = vmatprep.subr.mxu0 %v66
  %168 = vmatpush1.msra.mxu0 %v65
  %169 = vmatprep.subr.mxu0 %v62
  %170 = vmatpush1.msra.mxu0 %v61
  %171 = vmatprep.subr.mxu0 %v58
  %172 = vmatpush1.msra.mxu0 %v57
  %173 = vmatprep.subr.mxu0 %v54
  %174 = vmatpush1.msra.mxu0 %v53
  %175 = vmatprep.subr.mxu0 %v50
  %176 = vmatpush1.msra.mxu0 %v49
  %177 = vmatprep.subr.mxu0 %v46
  %178 = vmatpush1.msra.mxu0 %v45
  %179 = vmatprep.subr.mxu0 %v42
  %180 = vmatpush1.msra.mxu0 %v41
  %181 = vmatprep.subr.mxu0 %v38
  %182 = vmatpush1.msra.mxu0 %v37
  %183 = vmatprep.subr.mxu0 0.0
  %184 = vmatpush2.msra.mxu0 0.0
  %185 = vmatprep.subr.mxu0 0.0
  %186 = vmatpush2.msra.mxu0 0.0
  %187 = vmatprep.subr.mxu0 0.0
  %188 = vmatpush2.msra.mxu0 0.0
  %189 = vmatprep.subr.mxu0 0.0
  %190 = vmatpush2.msra.mxu0 0.0
  %191 = vmatprep.subr.mxu0 0.0
  %192 = vmatpush2.msra.mxu0 0.0
  %193 = vmatprep.subr.mxu0 0.0
  %194 = vmatpush2.msra.mxu0 0.0
  %195 = vmatprep.subr.mxu0 0.0
  %196 = vmatpush2.msra.mxu0 0.0
  %197 = vmatprep.subr.mxu0 0.0
  %198 = vmatpush2.msra.mxu0 0.0
  %199 = vmatprep.subr.mxu0 0.0
  %200 = vmatpush2.msra.mxu0 0.0
  %201 = vmatprep.subr.mxu0 0.0
  %202 = vmatpush2.msra.mxu0 0.0
  %203 = vmatprep.subr.mxu0 0.0
  %204 = vmatpush2.msra.mxu0 0.0
  %205 = vmatprep.subr.mxu0 0.0
  %206 = vmatpush2.msra.mxu0 0.0
  %207 = vmatprep.subr.mxu0 0.0
  %208 = vmatpush2.msra.mxu0 0.0
  %209 = vmatprep.subr.mxu0 0.0
  %210 = vmatpush2.msra.mxu0 0.0
  %211 = vmatprep.subr.mxu0 0.0
  %212 = vmatpush2.msra.mxu0 0.0
  %213 = vmatprep.subr.mxu0 0.0
  %214 = vmatpush2.msra.mxu0 0.0
  %215 = vmatprep.mubr.f32.mxu0 0.0
  %216 = vmatmul.mubr.f32.gmra.mxu0 %v69
  %v217 = vpop.f32.mrf.mxu0
  %v218 = vadd.f32 0.0, %v217
  %v219 = vpop.f32.mrf.mxu0
  %v220 = vadd.f32 0.0, %v219
  %221 = vmatprep.mubr.f32.mxu0 0.0
  %222 = vmatmul.mubr.f32.gmra.mxu0 %v72
  %v223 = vpop.f32.mrf.mxu0
  %v224 = vadd.f32 0.0, %v223
  %v225 = vpop.f32.mrf.mxu0
  %v226 = vadd.f32 0.0, %v225
  %227 = vdwg.mxu0
  %228 = vst [vmem:[#allocation2] sm:$0xff] %v141
  %229 = vst [vmem:[#allocation2 + $0x8] sm:$0xff] %v143
  %230 = vst [vmem:[#allocation2 + $0x10] sm:$0xff] %v218
  %231 = vst [vmem:[#allocation2 + $0x18] sm:$0xff] %v220
  %232 = vst [vmem:[#allocation2 + $0x20] sm:$0xff] %v147
  %233 = vst [vmem:[#allocation2 + $0x28] sm:$0xff] %v149
  %234 = vst [vmem:[#allocation2 + $0x30] sm:$0xff] %v224
  %235 = vst [vmem:[#allocation2 + $0x38] sm:$0xff] %v226
  %v236 = vld [vmem:[#allocation2] sm:$0xff]
  %v237 = vld [vmem:[#allocation2 + $0x8] sm:$0xff]
  %v238 = vld [vmem:[#allocation2 + $0x10] sm:$0xff]
  %239 = vst [vmem:[#allocation3] sm:$0xff] %v236
  %240 = vst [vmem:[#allocation3 + $0x8] sm:$0xff] %v237
  %241 = vst [vmem:[#allocation3 + $0x10] sm:$0xff] %v238
  %v242 = vld [vmem:[#allocation2 + $0x20] sm:$0xff]
  %v243 = vld [vmem:[#allocation2 + $0x28] sm:$0xff]
  %v244 = vld [vmem:[#allocation2 + $0x30] sm:$0xff]
  %245 = vst [vmem:[#allocation3 + $0x18] sm:$0xff] %v242
  %246 = vst [vmem:[#allocation3 + $0x20] sm:$0xff] %v243
  %247 = vst [vmem:[#allocation3 + $0x28] sm:$0xff] %v244
  %v248 = vld [vmem:[#allocation2] sm:$0xff]
  %v249 = vld [vmem:[#allocation2 + $0x8] sm:$0xff]
  %v250 = vld [vmem:[#allocation2 + $0x10] sm:$0xff]
  %v251 = vld [vmem:[#allocation2 + $0x18] sm:$0xff]
  %256 = vrot.lane.b32.xlu0 %v248, 127
  %v257 = vpop.permute.xlu0 %256
  %258 = vrot.lane.b32.xlu0 %v249, 127
  %v259 = vpop.permute.xlu0 %258
  %260 = vrot.lane.b32.xlu0 %v250, 127
  %v261 = vpop.permute.xlu0 %260
  %262 = vrot.lane.b32.xlu0 %v251, 127
  %v263 = vpop.permute.xlu0 %262
  %vm264 = vcmask 1039360
  %v265 = vsel %vm264, %v257, %v259
  %v266 = vsel %vm264, %v259, %v261
  %v267 = vsel %vm264, %v261, %v263
  %271 = vst [vmem:[#allocation3 + $0x30] sm:$0xff] %v265
  %272 = vst [vmem:[#allocation3 + $0x38] sm:$0xff] %v266
  %273 = vst [vmem:[#allocation3 + $0x40] sm:$0xff] %v267
  %v274 = vld [vmem:[#allocation2 + $0x20] sm:$0xff]
  %v275 = vld [vmem:[#allocation2 + $0x28] sm:$0xff]
  %v276 = vld [vmem:[#allocation2 + $0x30] sm:$0xff]
  %v277 = vld [vmem:[#allocation2 + $0x38] sm:$0xff]
  %282 = vrot.lane.b32.xlu0 %v274, 127
  %v283 = vpop.permute.xlu0 %282
  %284 = vrot.lane.b32.xlu0 %v275, 127
  %v285 = vpop.permute.xlu0 %284
  %286 = vrot.lane.b32.xlu0 %v276, 127
  %v287 = vpop.permute.xlu0 %286
  %288 = vrot.lane.b32.xlu0 %v277, 127
  %v289 = vpop.permute.xlu0 %288
  %v290 = vsel %vm264, %v283, %v285
  %v291 = vsel %vm264, %v285, %v287
  %v292 = vsel %vm264, %v287, %v289
  %296 = vst [vmem:[#allocation3 + $0x48] sm:$0xff] %v290
  %297 = vst [vmem:[#allocation3 + $0x50] sm:$0xff] %v291
  %298 = vst [vmem:[#allocation3 + $0x58] sm:$0xff] %v292
  %v299 = vld [vmem:[#allocation2] sm:$0xff]
  %v300 = vld [vmem:[#allocation2 + $0x8] sm:$0xff]
  %v301 = vld [vmem:[#allocation2 + $0x10] sm:$0xff]
  %v302 = vld [vmem:[#allocation2 + $0x18] sm:$0xff]
  %307 = vrot.lane.b32.xlu0 %v299, 126
  %v308 = vpop.permute.xlu0 %307
  %309 = vrot.lane.b32.xlu0 %v300, 126
  %v310 = vpop.permute.xlu0 %309
  %311 = vrot.lane.b32.xlu0 %v301, 126
  %v312 = vpop.permute.xlu0 %311
  %313 = vrot.lane.b32.xlu0 %v302, 126
  %v314 = vpop.permute.xlu0 %313
  %vm315 = vcmask 1031168
  %v316 = vsel %vm315, %v308, %v310
  %v317 = vsel %vm315, %v310, %v312
  %v318 = vsel %vm315, %v312, %v314
  %322 = vst [vmem:[#allocation3 + $0x60] sm:$0xff] %v316
  %323 = vst [vmem:[#allocation3 + $0x68] sm:$0xff] %v317
  %324 = vst [vmem:[#allocation3 + $0x70] sm:$0xff] %v318
  %v325 = vld [vmem:[#allocation2 + $0x20] sm:$0xff]
  %v326 = vld [vmem:[#allocation2 + $0x28] sm:$0xff]
  %v327 = vld [vmem:[#allocation2 + $0x30] sm:$0xff]
  %v328 = vld [vmem:[#allocation2 + $0x38] sm:$0xff]
  %333 = vrot.lane.b32.xlu0 %v325, 126
  %v334 = vpop.permute.xlu0 %333
  %335 = vrot.lane.b32.xlu0 %v326, 126
  %v336 = vpop.permute.xlu0 %335
  %337 = vrot.lane.b32.xlu0 %v327, 126
  %v338 = vpop.permute.xlu0 %337
  %339 = vrot.lane.b32.xlu0 %v328, 126
  %v340 = vpop.permute.xlu0 %339
  %v341 = vsel %vm315, %v334, %v336
  %v342 = vsel %vm315, %v336, %v338
  %v343 = vsel %vm315, %v338, %v340
  %347 = vst [vmem:[#allocation3 + $0x78] sm:$0xff] %v341
  %348 = vst [vmem:[#allocation3 + $0x80] sm:$0xff] %v342
  %349 = vst [vmem:[#allocation3 + $0x88] sm:$0xff] %v343
  %v350 = vld [vmem:[#allocation2] sm:$0xff]
  %v351 = vld [vmem:[#allocation2 + $0x8] sm:$0xff]
  %v352 = vld [vmem:[#allocation2 + $0x10] sm:$0xff]
  %v353 = vld [vmem:[#allocation2 + $0x18] sm:$0xff]
  %358 = vrot.lane.b32.xlu0 %v350, 110
  %v359 = vpop.permute.xlu0 %358
  %360 = vrot.lane.b32.xlu0 %v351, 110
  %v361 = vpop.permute.xlu0 %360
  %362 = vrot.lane.b32.xlu0 %v352, 110
  %v363 = vpop.permute.xlu0 %362
  %364 = vrot.lane.b32.xlu0 %v353, 110
  %v365 = vpop.permute.xlu0 %364
  %vm366 = vcmask 900096
  %v367 = vsel %vm366, %v359, %v361
  %v368 = vsel %vm366, %v361, %v363
  %v369 = vsel %vm366, %v363, %v365
  %373 = vst [vmem:[#allocation3 + $0x90] sm:$0xff] %v367
  %374 = vst [vmem:[#allocation3 + $0x98] sm:$0xff] %v368
  %375 = vst [vmem:[#allocation3 + $0xa0] sm:$0xff] %v369
  %v376 = vld [vmem:[#allocation2 + $0x20] sm:$0xff]
  %v377 = vld [vmem:[#allocation2 + $0x28] sm:$0xff]
  %v378 = vld [vmem:[#allocation2 + $0x30] sm:$0xff]
  %v379 = vld [vmem:[#allocation2 + $0x38] sm:$0xff]
  %384 = vrot.lane.b32.xlu0 %v376, 110
  %v385 = vpop.permute.xlu0 %384
  %386 = vrot.lane.b32.xlu0 %v377, 110
  %v387 = vpop.permute.xlu0 %386
  %388 = vrot.lane.b32.xlu0 %v378, 110
  %v389 = vpop.permute.xlu0 %388
  %390 = vrot.lane.b32.xlu0 %v379, 110
  %v391 = vpop.permute.xlu0 %390
  %v392 = vsel %vm366, %v385, %v387
  %v393 = vsel %vm366, %v387, %v389
  %v394 = vsel %vm366, %v389, %v391
  %398 = vst [vmem:[#allocation3 + $0xa8] sm:$0xff] %v392
  %399 = vst [vmem:[#allocation3 + $0xb0] sm:$0xff] %v393
  %400 = vst [vmem:[#allocation3 + $0xb8] sm:$0xff] %v394
  %v401 = vld [vmem:[#allocation2] sm:$0xff]
  %v402 = vld [vmem:[#allocation2 + $0x8] sm:$0xff]
  %v403 = vld [vmem:[#allocation2 + $0x10] sm:$0xff]
  %v404 = vld [vmem:[#allocation2 + $0x18] sm:$0xff]
  %409 = vrot.lane.b32.xlu0 %v401, 109
  %v410 = vpop.permute.xlu0 %409
  %411 = vrot.lane.b32.xlu0 %v402, 109
  %v412 = vpop.permute.xlu0 %411
  %413 = vrot.lane.b32.xlu0 %v403, 109
  %v414 = vpop.permute.xlu0 %413
  %415 = vrot.lane.b32.xlu0 %v404, 109
  %v416 = vpop.permute.xlu0 %415
  %vm417 = vcmask 891904
  %v418 = vsel %vm417, %v410, %v412
  %v419 = vsel %vm417, %v412, %v414
  %v420 = vsel %vm417, %v414, %v416
  %424 = vst [vmem:[#allocation3 + $0xc0] sm:$0xff] %v418
  %425 = vst [vmem:[#allocation3 + $0xc8] sm:$0xff] %v419
  %426 = vst [vmem:[#allocation3 + $0xd0] sm:$0xff] %v420
  %v427 = vld [vmem:[#allocation2 + $0x20] sm:$0xff]
  %v428 = vld [vmem:[#allocation2 + $0x28] sm:$0xff]
  %v429 = vld [vmem:[#allocation2 + $0x30] sm:$0xff]
  %v430 = vld [vmem:[#allocation2 + $0x38] sm:$0xff]
  %435 = vrot.lane.b32.xlu0 %v427, 109
  %v436 = vpop.permute.xlu0 %435
  %437 = vrot.lane.b32.xlu0 %v428, 109
  %v438 = vpop.permute.xlu0 %437
  %439 = vrot.lane.b32.xlu0 %v429, 109
  %v440 = vpop.permute.xlu0 %439
  %441 = vrot.lane.b32.xlu0 %v430, 109
  %v442 = vpop.permute.xlu0 %441
  %v443 = vsel %vm417, %v436, %v438
  %v444 = vsel %vm417, %v438, %v440
  %v445 = vsel %vm417, %v440, %v442
  %449 = vst [vmem:[#allocation3 + $0xd8] sm:$0xff] %v443
  %450 = vst [vmem:[#allocation3 + $0xe0] sm:$0xff] %v444
  %451 = vst [vmem:[#allocation3 + $0xe8] sm:$0xff] %v445
  %v452 = vld [vmem:[#allocation2] sm:$0xff]
  %v453 = vld [vmem:[#allocation2 + $0x8] sm:$0xff]
  %v454 = vld [vmem:[#allocation2 + $0x10] sm:$0xff]
  %v455 = vld [vmem:[#allocation2 + $0x18] sm:$0xff]
  %460 = vrot.lane.b32.xlu0 %v452, 108
  %v461 = vpop.permute.xlu0 %460
  %462 = vrot.lane.b32.xlu0 %v453, 108
  %v463 = vpop.permute.xlu0 %462
  %464 = vrot.lane.b32.xlu0 %v454, 108
  %v465 = vpop.permute.xlu0 %464
  %466 = vrot.lane.b32.xlu0 %v455, 108
  %v467 = vpop.permute.xlu0 %466
  %vm468 = vcmask 883712
  %v469 = vsel %vm468, %v461, %v463
  %v470 = vsel %vm468, %v463, %v465
  %v471 = vsel %vm468, %v465, %v467
  %475 = vst [vmem:[#allocation3 + $0xf0] sm:$0xff] %v469
  %476 = vst [vmem:[#allocation3 + $0xf8] sm:$0xff] %v470
  %477 = vst [vmem:[#allocation3 + $0x100] sm:$0xff] %v471
  %v478 = vld [vmem:[#allocation2 + $0x20] sm:$0xff]
  %v479 = vld [vmem:[#allocation2 + $0x28] sm:$0xff]
  %v480 = vld [vmem:[#allocation2 + $0x30] sm:$0xff]
  %v481 = vld [vmem:[#allocation2 + $0x38] sm:$0xff]
  %486 = vrot.lane.b32.xlu0 %v478, 108
  %v487 = vpop.permute.xlu0 %486
  %488 = vrot.lane.b32.xlu0 %v479, 108
  %v489 = vpop.permute.xlu0 %488
  %490 = vrot.lane.b32.xlu0 %v480, 108
  %v491 = vpop.permute.xlu0 %490
  %492 = vrot.lane.b32.xlu0 %v481, 108
  %v493 = vpop.permute.xlu0 %492
  %v494 = vsel %vm468, %v487, %v489
  %v495 = vsel %vm468, %v489, %v491
  %v496 = vsel %vm468, %v491, %v493
  %500 = vst [vmem:[#allocation3 + $0x108] sm:$0xff] %v494
  %501 = vst [vmem:[#allocation3 + $0x110] sm:$0xff] %v495
  %502 = vst [vmem:[#allocation3 + $0x118] sm:$0xff] %v496
  %v503 = vld [vmem:[#allocation2] sm:$0xff]
  %v504 = vld [vmem:[#allocation2 + $0x8] sm:$0xff]
  %v505 = vld [vmem:[#allocation2 + $0x10] sm:$0xff]
  %v506 = vld [vmem:[#allocation2 + $0x18] sm:$0xff]
  %511 = vrot.lane.b32.xlu0 %v503, 92
  %v512 = vpop.permute.xlu0 %511
  %513 = vrot.lane.b32.xlu0 %v504, 92
  %v514 = vpop.permute.xlu0 %513
  %515 = vrot.lane.b32.xlu0 %v505, 92
  %v516 = vpop.permute.xlu0 %515
  %517 = vrot.lane.b32.xlu0 %v506, 92
  %v518 = vpop.permute.xlu0 %517
  %vm519 = vcmask 752640
  %v520 = vsel %vm519, %v512, %v514
  %v521 = vsel %vm519, %v514, %v516
  %v522 = vsel %vm519, %v516, %v518
  %526 = vst [vmem:[#allocation3 + $0x120] sm:$0xff] %v520
  %527 = vst [vmem:[#allocation3 + $0x128] sm:$0xff] %v521
  %528 = vst [vmem:[#allocation3 + $0x130] sm:$0xff] %v522
  %v529 = vld [vmem:[#allocation2 + $0x20] sm:$0xff]
  %v530 = vld [vmem:[#allocation2 + $0x28] sm:$0xff]
  %v531 = vld [vmem:[#allocation2 + $0x30] sm:$0xff]
  %v532 = vld [vmem:[#allocation2 + $0x38] sm:$0xff]
  %537 = vrot.lane.b32.xlu0 %v529, 92
  %v538 = vpop.permute.xlu0 %537
  %539 = vrot.lane.b32.xlu0 %v530, 92
  %v540 = vpop.permute.xlu0 %539
  %541 = vrot.lane.b32.xlu0 %v531, 92
  %v542 = vpop.permute.xlu0 %541
  %543 = vrot.lane.b32.xlu0 %v532, 92
  %v544 = vpop.permute.xlu0 %543
  %v545 = vsel %vm519, %v538, %v540
  %v546 = vsel %vm519, %v540, %v542
  %v547 = vsel %vm519, %v542, %v544
  %551 = vst [vmem:[#allocation3 + $0x138] sm:$0xff] %v545
  %552 = vst [vmem:[#allocation3 + $0x140] sm:$0xff] %v546
  %553 = vst [vmem:[#allocation3 + $0x148] sm:$0xff] %v547
  %v554 = vld [vmem:[#allocation2] sm:$0xff]
  %v555 = vld [vmem:[#allocation2 + $0x8] sm:$0xff]
  %v556 = vld [vmem:[#allocation2 + $0x10] sm:$0xff]
  %v557 = vld [vmem:[#allocation2 + $0x18] sm:$0xff]
  %562 = vrot.lane.b32.xlu0 %v554, 91
  %v563 = vpop.permute.xlu0 %562
  %564 = vrot.lane.b32.xlu0 %v555, 91
  %v565 = vpop.permute.xlu0 %564
  %566 = vrot.lane.b32.xlu0 %v556, 91
  %v567 = vpop.permute.xlu0 %566
  %568 = vrot.lane.b32.xlu0 %v557, 91
  %v569 = vpop.permute.xlu0 %568
  %vm570 = vcmask 744448
  %v571 = vsel %vm570, %v563, %v565
  %v572 = vsel %vm570, %v565, %v567
  %v573 = vsel %vm570, %v567, %v569
  %577 = vst [vmem:[#allocation3 + $0x150] sm:$0xff] %v571
  %578 = vst [vmem:[#allocation3 + $0x158] sm:$0xff] %v572
  %579 = vst [vmem:[#allocation3 + $0x160] sm:$0xff] %v573
  %v580 = vld [vmem:[#allocation2 + $0x20] sm:$0xff]
  %v581 = vld [vmem:[#allocation2 + $0x28] sm:$0xff]
  %v582 = vld [vmem:[#allocation2 + $0x30] sm:$0xff]
  %v583 = vld [vmem:[#allocation2 + $0x38] sm:$0xff]
  %588 = vrot.lane.b32.xlu0 %v580, 91
  %v589 = vpop.permute.xlu0 %588
  %590 = vrot.lane.b32.xlu0 %v581, 91
  %v591 = vpop.permute.xlu0 %590
  %592 = vrot.lane.b32.xlu0 %v582, 91
  %v593 = vpop.permute.xlu0 %592
  %594 = vrot.lane.b32.xlu0 %v583, 91
  %v595 = vpop.permute.xlu0 %594
  %v596 = vsel %vm570, %v589, %v591
  %v597 = vsel %vm570, %v591, %v593
  %v598 = vsel %vm570, %v593, %v595
  %602 = vst [vmem:[#allocation3 + $0x168] sm:$0xff] %v596
  %603 = vst [vmem:[#allocation3 + $0x170] sm:$0xff] %v597
  %604 = vst [vmem:[#allocation3 + $0x178] sm:$0xff] %v598
  %v605 = vld [vmem:[#allocation2] sm:$0xff]
  %v606 = vld [vmem:[#allocation2 + $0x8] sm:$0xff]
  %v607 = vld [vmem:[#allocation2 + $0x10] sm:$0xff]
  %v608 = vld [vmem:[#allocation2 + $0x18] sm:$0xff]
  %613 = vrot.lane.b32.xlu0 %v605, 90
  %v614 = vpop.permute.xlu0 %613
  %615 = vrot.lane.b32.xlu0 %v606, 90
  %v616 = vpop.permute.xlu0 %615
  %617 = vrot.lane.b32.xlu0 %v607, 90
  %v618 = vpop.permute.xlu0 %617
  %619 = vrot.lane.b32.xlu0 %v608, 90
  %v620 = vpop.permute.xlu0 %619
  %vm621 = vcmask 736256
  %v622 = vsel %vm621, %v614, %v616
  %v623 = vsel %vm621, %v616, %v618
  %v624 = vsel %vm621, %v618, %v620
  %628 = vst [vmem:[#allocation3 + $0x180] sm:$0xff] %v622
  %629 = vst [vmem:[#allocation3 + $0x188] sm:$0xff] %v623
  %630 = vst [vmem:[#allocation3 + $0x190] sm:$0xff] %v624
  %v631 = vld [vmem:[#allocation2 + $0x20] sm:$0xff]
  %v632 = vld [vmem:[#allocation2 + $0x28] sm:$0xff]
  %v633 = vld [vmem:[#allocation2 + $0x30] sm:$0xff]
  %v634 = vld [vmem:[#allocation2 + $0x38] sm:$0xff]
  %639 = vrot.lane.b32.xlu0 %v631, 90
  %v640 = vpop.permute.xlu0 %639
  %641 = vrot.lane.b32.xlu0 %v632, 90
  %v642 = vpop.permute.xlu0 %641
  %643 = vrot.lane.b32.xlu0 %v633, 90
  %v644 = vpop.permute.xlu0 %643
  %645 = vrot.lane.b32.xlu0 %v634, 90
  %v646 = vpop.permute.xlu0 %645
  %v647 = vsel %vm621, %v640, %v642
  %v648 = vsel %vm621, %v642, %v644
  %v649 = vsel %vm621, %v644, %v646
  %653 = vst [vmem:[#allocation3 + $0x198] sm:$0xff] %v647
  %654 = vst [vmem:[#allocation3 + $0x1a0] sm:$0xff] %v648
  %655 = vst [vmem:[#allocation3 + $0x1a8] sm:$0xff] %v649
  %v656 = vld [vmem:[%s2] sm:$0xff]
  %v657 = vld [vmem:[#allocation3] sm:$0xff]
  %v658 = vld [vmem:[#allocation3 + $0x8] sm:$0xff]
  %v659 = vld [vmem:[#allocation3 + $0x10] sm:$0xff]
  %v660 = vld [vmem:[#allocation3 + $0x18] sm:$0xff]
  %v661 = vld [vmem:[#allocation3 + $0x20] sm:$0xff]
  %v662 = vld [vmem:[#allocation3 + $0x28] sm:$0xff]
  %v663 = vld [vmem:[#allocation3 + $0x30] sm:$0xff]
  %v664 = vld [vmem:[#allocation3 + $0x38] sm:$0xff]
  %v665 = vld [vmem:[#allocation3 + $0x40] sm:$0xff]
  %v666 = vld [vmem:[#allocation3 + $0x48] sm:$0xff]
  %v667 = vld [vmem:[#allocation3 + $0x50] sm:$0xff]
  %v668 = vld [vmem:[#allocation3 + $0x58] sm:$0xff]
  %v669 = vld [vmem:[#allocation3 + $0x60] sm:$0xff]
  %v670 = vld [vmem:[#allocation3 + $0x68] sm:$0xff]
  %v671 = vld [vmem:[#allocation3 + $0x70] sm:$0xff]
  %v672 = vld [vmem:[#allocation3 + $0x78] sm:$0xff]
  %v673 = vld [vmem:[#allocation3 + $0x80] sm:$0xff]
  %v674 = vld [vmem:[#allocation3 + $0x88] sm:$0xff]
  %v675 = vld [vmem:[#allocation3 + $0x90] sm:$0xff]
  %v676 = vld [vmem:[#allocation3 + $0x98] sm:$0xff]
  %v677 = vld [vmem:[#allocation3 + $0xa0] sm:$0xff]
  %v678 = vld [vmem:[#allocation3 + $0xa8] sm:$0xff]
  %v679 = vld [vmem:[#allocation3 + $0xb0] sm:$0xff]
  %v680 = vld [vmem:[#allocation3 + $0xb8] sm:$0xff]
  %v681 = vld [vmem:[#allocation3 + $0xc0] sm:$0xff]
  %v682 = vld [vmem:[#allocation3 + $0xc8] sm:$0xff]
  %v683 = vld [vmem:[#allocation3 + $0xd0] sm:$0xff]
  %v684 = vld [vmem:[#allocation3 + $0xd8] sm:$0xff]
  %v685 = vld [vmem:[#allocation3 + $0xe0] sm:$0xff]
  %v686 = vld [vmem:[#allocation3 + $0xe8] sm:$0xff]
  %v687 = vld [vmem:[#allocation3 + $0xf0] sm:$0xff]
  %v688 = vld [vmem:[#allocation3 + $0xf8] sm:$0xff]
  %v689 = vld [vmem:[#allocation3 + $0x100] sm:$0xff]
  %v690 = vld [vmem:[#allocation3 + $0x108] sm:$0xff]
  %v691 = vld [vmem:[#allocation3 + $0x110] sm:$0xff]
  %v692 = vld [vmem:[#allocation3 + $0x118] sm:$0xff]
  %v693 = vld [vmem:[#allocation3 + $0x120] sm:$0xff]
  %v694 = vld [vmem:[#allocation3 + $0x128] sm:$0xff]
  %v695 = vld [vmem:[#allocation3 + $0x130] sm:$0xff]
  %v696 = vld [vmem:[#allocation3 + $0x138] sm:$0xff]
  %v697 = vld [vmem:[#allocation3 + $0x140] sm:$0xff]
  %v698 = vld [vmem:[#allocation3 + $0x148] sm:$0xff]
  %v699 = vld [vmem:[#allocation3 + $0x150] sm:$0xff]
  %v700 = vld [vmem:[#allocation3 + $0x158] sm:$0xff]
  %v701 = vld [vmem:[#allocation3 + $0x160] sm:$0xff]
  %v702 = vld [vmem:[#allocation3 + $0x168] sm:$0xff]
  %v703 = vld [vmem:[#allocation3 + $0x170] sm:$0xff]
  %v704 = vld [vmem:[#allocation3 + $0x178] sm:$0xff]
  %v705 = vld [vmem:[#allocation3 + $0x180] sm:$0xff]
  %v706 = vld [vmem:[#allocation3 + $0x188] sm:$0xff]
  %v707 = vld [vmem:[#allocation3 + $0x190] sm:$0xff]
  %v708 = vld [vmem:[#allocation3 + $0x198] sm:$0xff]
  %v709 = vld [vmem:[#allocation3 + $0x1a0] sm:$0xff]
  %v710 = vld [vmem:[#allocation3 + $0x1a8] sm:$0xff]
  %vm711 = vcmask 588800
  %v713 = vsel %vm711, %v656, 0
  %715 = vmatprep.subr.mxu0 0.0
  %716 = vmatpush1.msra.mxu0 0.0
  %717 = vmatprep.subr.mxu0 0.0
  %718 = vmatpush1.msra.mxu0 0.0
  %719 = vmatprep.subr.mxu0 0.0
  %720 = vmatpush1.msra.mxu0 0.0
  %721 = vmatprep.subr.mxu0 0.0
  %722 = vmatpush1.msra.mxu0 0.0
  %723 = vmatprep.subr.mxu0 0.0
  %724 = vmatpush1.msra.mxu0 0.0
  %725 = vmatprep.subr.mxu0 0.0
  %726 = vmatpush1.msra.mxu0 0.0
  %727 = vmatprep.subr.mxu0 0.0
  %728 = vmatpush1.msra.mxu0 0.0
  %729 = vmatprep.subr.mxu0 %v706
  %730 = vmatpush1.msra.mxu0 %v705
  %731 = vmatprep.subr.mxu0 %v700
  %732 = vmatpush1.msra.mxu0 %v699
  %733 = vmatprep.subr.mxu0 %v694
  %734 = vmatpush1.msra.mxu0 %v693
  %735 = vmatprep.subr.mxu0 %v688
  %736 = vmatpush1.msra.mxu0 %v687
  %737 = vmatprep.subr.mxu0 %v682
  %738 = vmatpush1.msra.mxu0 %v681
  %739 = vmatprep.subr.mxu0 %v676
  %740 = vmatpush1.msra.mxu0 %v675
  %741 = vmatprep.subr.mxu0 %v670
  %742 = vmatpush1.msra.mxu0 %v669
  %743 = vmatprep.subr.mxu0 %v664
  %744 = vmatpush1.msra.mxu0 %v663
  %745 = vmatprep.subr.mxu0 %v658
  %746 = vmatpush1.msra.mxu0 %v657
  %747 = vmatprep.subr.mxu0 0.0
  %748 = vmatpush2.msra.mxu0 0.0
  %749 = vmatprep.subr.mxu0 0.0
  %750 = vmatpush2.msra.mxu0 0.0
  %751 = vmatprep.subr.mxu0 0.0
  %752 = vmatpush2.msra.mxu0 0.0
  %753 = vmatprep.subr.mxu0 0.0
  %754 = vmatpush2.msra.mxu0 0.0
  %755 = vmatprep.subr.mxu0 0.0
  %756 = vmatpush2.msra.mxu0 0.0
  %757 = vmatprep.subr.mxu0 0.0
  %758 = vmatpush2.msra.mxu0 0.0
  %759 = vmatprep.subr.mxu0 0.0
  %760 = vmatpush2.msra.mxu0 0.0
  %761 = vmatprep.subr.mxu0 0.0
  %762 = vmatpush2.msra.mxu0 0.0
  %763 = vmatprep.subr.mxu0 0.0
  %764 = vmatpush2.msra.mxu0 0.0
  %765 = vmatprep.subr.mxu0 0.0
  %766 = vmatpush2.msra.mxu0 0.0
  %767 = vmatprep.subr.mxu0 0.0
  %768 = vmatpush2.msra.mxu0 0.0
  %769 = vmatprep.subr.mxu0 0.0
  %770 = vmatpush2.msra.mxu0 0.0
  %771 = vmatprep.subr.mxu0 0.0
  %772 = vmatpush2.msra.mxu0 0.0
  %773 = vmatprep.subr.mxu0 0.0
  %774 = vmatpush2.msra.mxu0 0.0
  %775 = vmatprep.subr.mxu0 0.0
  %776 = vmatpush2.msra.mxu0 0.0
  %777 = vmatprep.subr.mxu0 0.0
  %778 = vmatpush2.msra.mxu0 0.0
  %779 = vmatprep.mubr.f32.mxu0 0.0
  %780 = vmatmul.mubr.f32.gmra.mxu0 %v713
  %v781 = vpop.f32.mrf.mxu0
  %v782 = vadd.f32 0.0, %v781
  %v783 = vpop.f32.mrf.mxu0
  %v784 = vadd.f32 0.0, %v783
  %785 = vdwg.mxu0
  %786 = vmatprep.subr.mxu0 0.0
  %787 = vmatpush1.msra.mxu0 0.0
  %788 = vmatprep.subr.mxu0 0.0
  %789 = vmatpush1.msra.mxu0 0.0
  %790 = vmatprep.subr.mxu0 0.0
  %791 = vmatpush1.msra.mxu0 0.0
  %792 = vmatprep.subr.mxu0 0.0
  %793 = vmatpush1.msra.mxu0 0.0
  %794 = vmatprep.subr.mxu0 0.0
  %795 = vmatpush1.msra.mxu0 0.0
  %796 = vmatprep.subr.mxu0 0.0
  %797 = vmatpush1.msra.mxu0 0.0
  %798 = vmatprep.subr.mxu0 0.0
  %799 = vmatpush1.msra.mxu0 0.0
  %800 = vmatprep.subr.mxu0 %v708
  %801 = vmatpush1.msra.mxu0 %v707
  %802 = vmatprep.subr.mxu0 %v702
  %803 = vmatpush1.msra.mxu0 %v701
  %804 = vmatprep.subr.mxu0 %v696
  %805 = vmatpush1.msra.mxu0 %v695
  %806 = vmatprep.subr.mxu0 %v690
  %807 = vmatpush1.msra.mxu0 %v689
  %808 = vmatprep.subr.mxu0 %v684
  %809 = vmatpush1.msra.mxu0 %v683
  %810 = vmatprep.subr.mxu0 %v678
  %811 = vmatpush1.msra.mxu0 %v677
  %812 = vmatprep.subr.mxu0 %v672
  %813 = vmatpush1.msra.mxu0 %v671
  %814 = vmatprep.subr.mxu0 %v666
  %815 = vmatpush1.msra.mxu0 %v665
  %816 = vmatprep.subr.mxu0 %v660
  %817 = vmatpush1.msra.mxu0 %v659
  %818 = vmatprep.subr.mxu0 0.0
  %819 = vmatpush2.msra.mxu0 0.0
  %820 = vmatprep.subr.mxu0 0.0
  %821 = vmatpush2.msra.mxu0 0.0
  %822 = vmatprep.subr.mxu0 0.0
  %823 = vmatpush2.msra.mxu0 0.0
  %824 = vmatprep.subr.mxu0 0.0
  %825 = vmatpush2.msra.mxu0 0.0
  %826 = vmatprep.subr.mxu0 0.0
  %827 = vmatpush2.msra.mxu0 0.0
  %828 = vmatprep.subr.mxu0 0.0
  %829 = vmatpush2.msra.mxu0 0.0
  %830 = vmatprep.subr.mxu0 0.0
  %831 = vmatpush2.msra.mxu0 0.0
  %832 = vmatprep.subr.mxu0 0.0
  %833 = vmatpush2.msra.mxu0 0.0
  %834 = vmatprep.subr.mxu0 0.0
  %835 = vmatpush2.msra.mxu0 0.0
  %836 = vmatprep.subr.mxu0 0.0
  %837 = vmatpush2.msra.mxu0 0.0
  %838 = vmatprep.subr.mxu0 0.0
  %839 = vmatpush2.msra.mxu0 0.0
  %840 = vmatprep.subr.mxu0 0.0
  %841 = vmatpush2.msra.mxu0 0.0
  %842 = vmatprep.subr.mxu0 0.0
  %843 = vmatpush2.msra.mxu0 0.0
  %844 = vmatprep.subr.mxu0 0.0
  %845 = vmatpush2.msra.mxu0 0.0
  %846 = vmatprep.subr.mxu0 0.0
  %847 = vmatpush2.msra.mxu0 0.0
  %848 = vmatprep.subr.mxu0 0.0
  %849 = vmatpush2.msra.mxu0 0.0
  %850 = vmatprep.mubr.f32.mxu0 0.0
  %851 = vmatmul.mubr.f32.gmra.mxu0 %v713
  %v852 = vpop.f32.mrf.mxu0
  %v853 = vadd.f32 0.0, %v852
  %v854 = vpop.f32.mrf.mxu0
  %v855 = vadd.f32 0.0, %v854
  %856 = vdwg.mxu0
  %857 = vmatprep.subr.mxu0 0.0
  %858 = vmatpush1.msra.mxu0 0.0
  %859 = vmatprep.subr.mxu0 0.0
  %860 = vmatpush1.msra.mxu0 0.0
  %861 = vmatprep.subr.mxu0 0.0
  %862 = vmatpush1.msra.mxu0 0.0
  %863 = vmatprep.subr.mxu0 0.0
  %864 = vmatpush1.msra.mxu0 0.0
  %865 = vmatprep.subr.mxu0 0.0
  %866 = vmatpush1.msra.mxu0 0.0
  %867 = vmatprep.subr.mxu0 0.0
  %868 = vmatpush1.msra.mxu0 0.0
  %869 = vmatprep.subr.mxu0 0.0
  %870 = vmatpush1.msra.mxu0 0.0
  %871 = vmatprep.subr.mxu0 %v710
  %872 = vmatpush1.msra.mxu0 %v709
  %873 = vmatprep.subr.mxu0 %v704
  %874 = vmatpush1.msra.mxu0 %v703
  %875 = vmatprep.subr.mxu0 %v698
  %876 = vmatpush1.msra.mxu0 %v697
  %877 = vmatprep.subr.mxu0 %v692
  %878 = vmatpush1.msra.mxu0 %v691
  %879 = vmatprep.subr.mxu0 %v686
  %880 = vmatpush1.msra.mxu0 %v685
  %881 = vmatprep.subr.mxu0 %v680
  %882 = vmatpush1.msra.mxu0 %v679
  %883 = vmatprep.subr.mxu0 %v674
  %884 = vmatpush1.msra.mxu0 %v673
  %885 = vmatprep.subr.mxu0 %v668
  %886 = vmatpush1.msra.mxu0 %v667
  %887 = vmatprep.subr.mxu0 %v662
  %888 = vmatpush1.msra.mxu0 %v661
  %889 = vmatprep.subr.mxu0 0.0
  %890 = vmatpush2.msra.mxu0 0.0
  %891 = vmatprep.subr.mxu0 0.0
  %892 = vmatpush2.msra.mxu0 0.0
  %893 = vmatprep.subr.mxu0 0.0
  %894 = vmatpush2.msra.mxu0 0.0
  %895 = vmatprep.subr.mxu0 0.0
  %896 = vmatpush2.msra.mxu0 0.0
  %897 = vmatprep.subr.mxu0 0.0
  %898 = vmatpush2.msra.mxu0 0.0
  %899 = vmatprep.subr.mxu0 0.0
  %900 = vmatpush2.msra.mxu0 0.0
  %901 = vmatprep.subr.mxu0 0.0
  %902 = vmatpush2.msra.mxu0 0.0
  %903 = vmatprep.subr.mxu0 0.0
  %904 = vmatpush2.msra.mxu0 0.0
  %905 = vmatprep.subr.mxu0 0.0
  %906 = vmatpush2.msra.mxu0 0.0
  %907 = vmatprep.subr.mxu0 0.0
  %908 = vmatpush2.msra.mxu0 0.0
  %909 = vmatprep.subr.mxu0 0.0
  %910 = vmatpush2.msra.mxu0 0.0
  %911 = vmatprep.subr.mxu0 0.0
  %912 = vmatpush2.msra.mxu0 0.0
  %913 = vmatprep.subr.mxu0 0.0
  %914 = vmatpush2.msra.mxu0 0.0
  %915 = vmatprep.subr.mxu0 0.0
  %916 = vmatpush2.msra.mxu0 0.0
  %917 = vmatprep.subr.mxu0 0.0
  %918 = vmatpush2.msra.mxu0 0.0
  %919 = vmatprep.subr.mxu0 0.0
  %920 = vmatpush2.msra.mxu0 0.0
  %921 = vmatprep.mubr.f32.mxu0 0.0
  %922 = vmatmul.mubr.f32.gmra.mxu0 %v713
  %v923 = vpop.f32.mrf.mxu0
  %v924 = vadd.f32 0.0, %v923
  %v925 = vpop.f32.mrf.mxu0
  %v926 = vadd.f32 0.0, %v925
  %927 = vdwg.mxu0
  %v928 = vlaneseq
  %v929 = vand.u32 %v928, 127
  %v930 = vadd.s32 %v929, 128
  %v931 = vadd.s32 %v929, 256
  %v932 = vadd.s32 %v929, 384
  %v933 = vadd.s32 %v929, 512
  %v934 = vadd.s32 %v929, 640
  %v935 = vcvt.s32.f32 %v929
  %v936 = vcvt.s32.f32 %v930
  %v937 = vcvt.s32.f32 %v931
  %v938 = vcvt.s32.f32 %v932
  %v939 = vcvt.s32.f32 %v933
  %v940 = vcvt.s32.f32 %v934
  %v941 = vadd.f32 %v935, 0.5
  %v942 = vadd.f32 %v936, 0.5
  %v943 = vadd.f32 %v937, 0.5
  %v944 = vadd.f32 %v938, 0.5
  %v945 = vadd.f32 %v939, 0.5
  %v946 = vadd.f32 %v940, 0.5
  %v947 = vrcp.pop 384.0
  %v948 = vmul.f32 %v941, %v947
  %v949 = vmul.f32 %v942, %v947
  %v950 = vmul.f32 %v943, %v947
  %v951 = vmul.f32 %v944, %v947
  %v952 = vmul.f32 %v945, %v947
  %v953 = vmul.f32 %v946, %v947
  %v954 = vfloor.f32 %v948
  %v955 = vfloor.f32 %v949
  %v956 = vfloor.f32 %v950
  %v957 = vfloor.f32 %v951
  %v958 = vfloor.f32 %v952
  %v959 = vfloor.f32 %v953
  %v960 = vmul.f32 %v954, 384.0
  %v961 = vmul.f32 %v955, 384.0
  %v962 = vmul.f32 %v956, 384.0
  %v963 = vmul.f32 %v957, 384.0
  %v964 = vmul.f32 %v958, 384.0
  %v965 = vmul.f32 %v959, 384.0
  %v966 = vsub.f32 %v935, %v960
  %v967 = vsub.f32 %v936, %v961
  %v968 = vsub.f32 %v937, %v962
  %v969 = vsub.f32 %v938, %v963
  %v970 = vsub.f32 %v939, %v964
  %v971 = vsub.f32 %v940, %v965
  %v972 = vadd.f32 %v966, 0.5
  %v973 = vadd.f32 %v967, 0.5
  %v974 = vadd.f32 %v968, 0.5
  %v975 = vadd.f32 %v969, 0.5
  %v976 = vadd.f32 %v970, 0.5
  %v977 = vadd.f32 %v971, 0.5
  %v978 = vrcp.pop 18.0
  %v979 = vmul.f32 %v972, %v978
  %v980 = vmul.f32 %v973, %v978
  %v981 = vmul.f32 %v974, %v978
  %v982 = vmul.f32 %v975, %v978
  %v983 = vmul.f32 %v976, %v978
  %v984 = vmul.f32 %v977, %v978
  %v985 = vfloor.f32 %v979
  %v986 = vfloor.f32 %v980
  %v987 = vfloor.f32 %v981
  %v988 = vfloor.f32 %v982
  %v989 = vfloor.f32 %v983
  %v990 = vfloor.f32 %v984
  %v991 = vmul.f32 %v985, 18.0
  %v992 = vmul.f32 %v986, 18.0
  %v993 = vmul.f32 %v987, 18.0
  %v994 = vmul.f32 %v988, 18.0
  %v995 = vmul.f32 %v989, 18.0
  %v996 = vmul.f32 %v990, 18.0
  %v997 = vsub.f32 %v966, %v991
  %v998 = vsub.f32 %v967, %v992
  %v999 = vsub.f32 %v968, %v993
  %v1000 = vsub.f32 %v969, %v994
  %v1001 = vsub.f32 %v970, %v995
  %v1002 = vsub.f32 %v971, %v996
  %vm1003 = vcmp.lt.f32.partialorder %v966, 288.0
  %vm1004 = vcmp.lt.f32.partialorder %v967, 288.0
  %vm1005 = vcmp.lt.f32.partialorder %v968, 288.0
  %vm1006 = vcmp.lt.f32.partialorder %v969, 288.0
  %vm1007 = vcmp.lt.f32.partialorder %v970, 288.0
  %vm1008 = vcmp.lt.f32.partialorder %v971, 288.0
  %vm1009 = vcmp.lt.f32.partialorder %v997, 16.0
  %vm1010 = vcmp.lt.f32.partialorder %v998, 16.0
  %vm1011 = vcmp.lt.f32.partialorder %v999, 16.0
  %vm1012 = vcmp.lt.f32.partialorder %v1000, 16.0
  %vm1013 = vcmp.lt.f32.partialorder %v1001, 16.0
  %vm1014 = vcmp.lt.f32.partialorder %v1002, 16.0
  %vm1015 = vmand %vm1003, %vm1009
  %vm1016 = vmand %vm1004, %vm1010
  %vm1017 = vmand %vm1005, %vm1011
  %vm1018 = vmand %vm1006, %vm1012
  %vm1019 = vmand %vm1007, %vm1013
  %vm1020 = vmand %vm1008, %vm1014
  %v1021 = vsel %vm1015, 1.0, 0.0
  %v1022 = vsel %vm1016, 1.0, 0.0
  %v1023 = vsel %vm1017, 1.0, 0.0
  %v1024 = vsel %vm1018, 1.0, 0.0
  %v1025 = vsel %vm1019, 1.0, 0.0
  %v1026 = vsel %vm1020, 1.0, 0.0
  %v1027 = vmul.f32 %v782, %v1021
  %v1028 = vmul.f32 %v784, %v1022
  %v1029 = vmul.f32 %v853, %v1023
  %v1030 = vmul.f32 %v855, %v1024
  %v1031 = vmul.f32 %v924, %v1025
  %v1032 = vmul.f32 %v926, %v1026
  %v1033 = vadd.f32 %v1027, %v1028
  %v1034 = vadd.f32 %v1033, %v1029
  %v1035 = vadd.f32 %v1034, %v1030
  %v1036 = vadd.f32 %v1035, %v1031
  %v1037 = vadd.f32 %v1036, %v1032
  %1038 = vadd.xlane.f32.xlu0 %v1037
  %v1039 = vpop.xlane.xlu0 %1038
  %v1040 = vmul.f32 %v1039, 0.001953125
  %v1041 = vmul.f32 %v1027, %v782
  %v1042 = vmul.f32 %v1028, %v784
  %v1043 = vmul.f32 %v1029, %v853
  %v1044 = vmul.f32 %v1030, %v855
  %v1045 = vmul.f32 %v1031, %v924
  %v1046 = vmul.f32 %v1032, %v926
  %v1047 = vadd.f32 %v1041, %v1042
  %v1048 = vadd.f32 %v1047, %v1043
  %v1049 = vadd.f32 %v1048, %v1044
  %v1050 = vadd.f32 %v1049, %v1045
  %v1051 = vadd.f32 %v1050, %v1046
  %1052 = vadd.xlane.f32.xlu0 %v1051
  %v1053 = vpop.xlane.xlu0 %1052
  %v1054 = vmul.f32 %v1053, 0.001953125
  %v1055 = vmul.f32 %v1040, %v1040
  %v1056 = vsub.f32 %v1054, %v1055
  %v1057 = vmax.f32 %v1056, 0.0
  %v1058 = vld [vmem:[%s3] sm:$0xff]
  %v1059 = vadd.f32 %v1057, 1e-05
  %v1060 = vrsqrt.pop %v1059
  %v1061 = vmul.f32 %v1058, %v1060
  %v1062 = vmul.f32 %v1040, %v1061
  %1064 = vrot.lane.b32.xlu0 %v1062, 1
  %v1065 = vpop.permute.xlu0 %1064
  %v1067 = vsub.f32 %v1058, %v1065
  %1069 = vset.pattern.permute.xlu0 0
  %1070 = vperm.xlu0 %1069, %v1061
  %v1071 = vpop.permute.xlu0 %1070
  %v1073 = vmul.f32 %v782, %v1071
  %v1074 = vmul.f32 %v784, %v1071
  %v1075 = vmul.f32 %v853, %v1071
  %v1076 = vmul.f32 %v855, %v1071
  %v1077 = vmul.f32 %v924, %v1071
  %v1078 = vmul.f32 %v926, %v1071
  %1080 = vset.pattern.permute.xlu0 1
  %1081 = vperm.xlu0 %1080, %v1067
  %v1082 = vpop.permute.xlu0 %1081
  %v1084 = vadd.f32 %v1073, %v1082
  %v1085 = vadd.f32 %v1074, %v1082
  %v1086 = vadd.f32 %v1075, %v1082
  %v1087 = vadd.f32 %v1076, %v1082
  %v1088 = vadd.f32 %v1077, %v1082
  %v1089 = vadd.f32 %v1078, %v1082
  %v1090 = vmax.f32 %v1084, 0.0
  %v1091 = vmax.f32 %v1085, 0.0
  %v1092 = vmax.f32 %v1086, 0.0
  %v1093 = vmax.f32 %v1087, 0.0
  %v1094 = vmax.f32 %v1088, 0.0
  %v1095 = vmax.f32 %v1089, 0.0
  %1096 = vst [vmem:[%s4] sm:$0xff] %v1090
  %1097 = vst [vmem:[%s4 + $0x8] sm:$0xff] %v1091
  %1098 = vst [vmem:[%s4 + $0x10] sm:$0xff] %v1092
  %1099 = vst [vmem:[%s4 + $0x18] sm:$0xff] %v1093
  %1100 = vst [vmem:[%s4 + $0x20] sm:$0xff] %v1094
  %1101 = vst [vmem:[%s4 + $0x28] sm:$0xff] %v1095
  // Predicated region
  $region18: #{_up_conv1_impl.1} parent=0 // pred_check
    _
  $region19: #{_up_conv1_impl.1} parent=0 // pred_check_branch
    %1103 = sbr.rel (0) target = $region21
  $region20: #{_up_conv1_impl.1} parent=0 // pred_region
    _
  $region21: #{_up_conv1_impl.1} parent=0 // pred_fallthru
    _
  // Predicated region
  $region22: #{_up_conv1_impl.1} parent=0 // pred_check
    _
  $region23: #{_up_conv1_impl.1} parent=0 // pred_check_branch
    %1105 = sbr.rel (0) target = $region25
  $region24: #{_up_conv1_impl.1} parent=0 // pred_region
    _
  $region25: #{_up_conv1_impl.1} parent=0 // pred_fallthru
    _

</llo_original>
